<compile_context>
chip_gen: v6e
topology: v6e:2x2x1
jax: 0.10.0
libtpu: 0.0.40
codegen_flags: <defaults>
</compile_context>

<pallas_src>
import jax
import jax.numpy as jnp
from jax.experimental import pallas as pl
from jax.experimental.pallas import tpu as pltpu


def dqn_kernel(x_ref, w1_ref, b1_ref, w2_ref, b2_ref, w3_ref, b3_ref, o_ref):
    x = x_ref[...]                      # (TB, IN) f32, IN is tiny (4)
    in_dim = x_ref.shape[1]

    # ---- fc1 + relu on the VPU: h1 = relu(b1 + sum_k x[:, k] * w1[k, :]) ----
    # Avoids an MXU matmul whose contraction depth would be mostly zero-padding.
    h1 = b1_ref[...] + x[:, 0:1] * w1_ref[0:1, :]
    for k in range(1, in_dim):          # static, unrolled at trace time
        h1 = h1 + x[:, k:k + 1] * w1_ref[k:k + 1, :]
    h1 = jnp.maximum(h1, 0.0)           # (TB, 128) f32

    # ---- fc2 + relu: bf16 MXU matmul, f32 accumulation, f32 elementwise ----
    h2 = jnp.dot(h1.astype(jnp.bfloat16), w2_ref[...],
                 preferred_element_type=jnp.float32)
    h2 = jnp.maximum(h2 + b2_ref[...], 0.0)     # (TB, 128) f32

    # ---- fc3 (output padded to 128 lanes -> lane-dense store) ----
    out = jnp.dot(h2.astype(jnp.bfloat16), w3_ref[...],
                  preferred_element_type=jnp.float32)
    o_ref[...] = (out + b3_ref[...]).astype(o_ref.dtype)


def _round_up(n, m):
    return ((n + m - 1) // m) * m


def dqn_forward(x, w1, b1, w2, b2, w3, b3, *, block_b=1024):
    """x: (B, in_dim) f32; weights stored (in, out); biases (1, out). Returns (B, out_dim)."""
    B, in_dim = x.shape
    hidden = w1.shape[1]
    out_dim = w3.shape[1]
    lanes = 128
    out_pad = _round_up(out_dim, lanes)

    # Lane-dense output: zero-pad the last layer to a multiple of 128 lanes.
    w3p = jnp.zeros((hidden, out_pad), jnp.float32).at[:, :out_dim].set(w3)
    b3p = jnp.zeros((1, out_pad), jnp.float32).at[:, :out_dim].set(b3)

    # bf16 weights for the MXU matmuls (accumulation stays f32 in-kernel).
    w2b = w2.astype(jnp.bfloat16)
    w3b = w3p.astype(jnp.bfloat16)

    # Batch tile: amortize per-grid-step overhead at large B; activation tiles
    # (~2.5 MiB at tb=1024) stay well inside the scoped-VMEM default on all chips.
    tb = min(block_b, _round_up(B, 8))
    Bp = _round_up(B, tb)
    if Bp != B:
        x = jnp.pad(x, ((0, Bp - B), (0, 0)))

    grid = (Bp // tb,)
    resident = lambda shape: pl.BlockSpec(shape, lambda i: (0, 0))  # weights stay in VMEM

    out = pl.pallas_call(
        dqn_kernel,
        out_shape=jax.ShapeDtypeStruct((Bp, out_pad), jnp.float32),
        grid=grid,
        in_specs=[
            pl.BlockSpec((tb, in_dim), lambda i: (i, 0)),          # x: streamed per batch tile
            resident((in_dim, hidden)), resident((1, hidden)),     # w1 (f32), b1
            resident((hidden, hidden)), resident((1, hidden)),     # w2 (bf16), b2
            resident((hidden, out_pad)), resident((1, out_pad)),   # w3 (bf16, padded), b3
        ],
        out_specs=pl.BlockSpec((tb, out_pad), lambda i: (i, 0)),
        compiler_params=pltpu.CompilerParams(
            dimension_semantics=("parallel",)),
    )(x, w1, b1, w2b, b2, w3b, b3p)

    return out[:B, :out_dim]


def init_linear(key, in_features, out_features):
    """Deterministic init matching nn.Linear's U(-1/sqrt(fan_in), 1/sqrt(fan_in))."""
    kw, kb = jax.random.split(key)
    bound = 1.0 / jnp.sqrt(jnp.float32(in_features))
    # stored as (in, out) so kernel does x @ W  (== PyTorch x @ W.T + b)
    w = jax.random.uniform(kw, (in_features, out_features), jnp.float32, -bound, bound)
    b = jax.random.uniform(kb, (1, out_features), jnp.float32, -bound, bound)
    return w, b


if __name__ == "__main__":
    # CartPole-like dims: input_dim=4 (state), output_dim=2 (actions), hidden=128
    input_dim, hidden, output_dim = 4, 128, 2
    batch = 8

    root = jax.random.PRNGKey(0)
    kx, k1, k2, k3 = jax.random.split(root, 4)

    x = jax.random.normal(kx, (batch, input_dim), jnp.float32)
    w1, b1 = init_linear(k1, input_dim, hidden)
    w2, b2 = init_linear(k2, hidden, hidden)
    w3, b3 = init_linear(k3, hidden, output_dim)

    out = dqn_forward(x, w1, b1, w2, b2, w3, b3)
    out = jax.block_until_ready(out)
    assert out.shape == (batch, output_dim)

    # Reference with matching bf16-rounded matmul operands (f32 accumulation),
    # so the comparison is tight despite the in-kernel bf16 MXU path.
    w2r = w2.astype(jnp.bfloat16).astype(jnp.float32)
    w3r = w3.astype(jnp.bfloat16).astype(jnp.float32)
    h1 = jnp.maximum(x @ w1 + b1, 0.0)
    h2 = jnp.maximum(h1.astype(jnp.bfloat16).astype(jnp.float32) @ w2r + b2, 0.0)
    ref = h2.astype(jnp.bfloat16).astype(jnp.float32) @ w3r + b3
    assert jnp.allclose(out, ref, atol=2e-3, rtol=2e-3), float(jnp.max(jnp.abs(out - ref)))

    # Loose sanity check against the pure-f32 reference.
    h1f = jnp.maximum(x @ w1 + b1, 0.0)
    h2f = jnp.maximum(h1f @ w2 + b2, 0.0)
    reff = h2f @ w3 + b3
    assert jnp.allclose(out, reff, atol=5e-2, rtol=5e-2)

    print("KERNEL_OK")
</pallas_src>

<mosaic_0001>
module attributes {stable_mosaic.version = 11 : i64} {
  func.func @dqn_kernel(%arg0: i32, %arg1: memref<8x4xf32, #tpu.memory_space<vmem>>, %arg2: memref<4x128xf32, #tpu.memory_space<vmem>>, %arg3: memref<1x128xf32, #tpu.memory_space<vmem>>, %arg4: memref<128x128xbf16, #tpu.memory_space<vmem>>, %arg5: memref<1x128xf32, #tpu.memory_space<vmem>>, %arg6: memref<128x128xbf16, #tpu.memory_space<vmem>>, %arg7: memref<1x128xf32, #tpu.memory_space<vmem>>, %arg8: memref<8x128xf32, #tpu.memory_space<vmem>>) attributes {dimension_semantics = [#tpu.dimension_semantics<parallel>], iteration_bounds = array<i64: 1>, scalar_prefetch = 0 : i64, scratch_operands = 0 : i64, tpu.core_type = #tpu.core_type<tc>, window_params = [{transform_indices = @transform_0, window_bounds = array<i64: 8, 4>}, {pipeline_mode = #tpu.pipeline_mode<synchronous>, transform_indices = @transform_1, window_bounds = array<i64: 4, 128>}, {pipeline_mode = #tpu.pipeline_mode<synchronous>, transform_indices = @transform_2, window_bounds = array<i64: 1, 128>}, {pipeline_mode = #tpu.pipeline_mode<synchronous>, transform_indices = @transform_3, window_bounds = array<i64: 128, 128>}, {pipeline_mode = #tpu.pipeline_mode<synchronous>, transform_indices = @transform_4, window_bounds = array<i64: 1, 128>}, {pipeline_mode = #tpu.pipeline_mode<synchronous>, transform_indices = @transform_5, window_bounds = array<i64: 128, 128>}, {pipeline_mode = #tpu.pipeline_mode<synchronous>, transform_indices = @transform_6, window_bounds = array<i64: 1, 128>}, {transform_indices = @transform_7, window_bounds = array<i64: 8, 128>}]} {
    %c0 = arith.constant 0 : index
    %c0_0 = arith.constant 0 : index
    %0 = vector.load %arg1[%c0, %c0_0] : memref<8x4xf32, #tpu.memory_space<vmem>>, vector<8x4xf32>
    %c0_1 = arith.constant 0 : index
    %c0_2 = arith.constant 0 : index
    %1 = vector.load %arg3[%c0_1, %c0_2] : memref<1x128xf32, #tpu.memory_space<vmem>>, vector<1x128xf32>
    %2 = vector.extract_strided_slice %0 {offsets = [0, 0], sizes = [8, 1], strides = [1, 1]} : vector<8x4xf32> to vector<8x1xf32>
    %c0_3 = arith.constant 0 : index
    %c0_4 = arith.constant 0 : index
    %3 = vector.load %arg2[%c0_3, %c0_4] : memref<4x128xf32, #tpu.memory_space<vmem>>, vector<1x128xf32>
    %4 = vector.broadcast %2 : vector<8x1xf32> to vector<8x128xf32>
    %5 = vector.broadcast %3 : vector<1x128xf32> to vector<8x128xf32>
    %6 = arith.mulf %4, %5 : vector<8x128xf32>
    %7 = vector.broadcast %1 : vector<1x128xf32> to vector<8x128xf32>
    %8 = arith.addf %7, %6 : vector<8x128xf32>
    %9 = vector.extract_strided_slice %0 {offsets = [0, 1], sizes = [8, 1], strides = [1, 1]} : vector<8x4xf32> to vector<8x1xf32>
    %c1 = arith.constant 1 : index
    %c0_5 = arith.constant 0 : index
    %10 = vector.load %arg2[%c1, %c0_5] : memref<4x128xf32, #tpu.memory_space<vmem>>, vector<1x128xf32>
    %11 = vector.broadcast %9 : vector<8x1xf32> to vector<8x128xf32>
    %12 = vector.broadcast %10 : vector<1x128xf32> to vector<8x128xf32>
    %13 = arith.mulf %11, %12 : vector<8x128xf32>
    %14 = arith.addf %8, %13 : vector<8x128xf32>
    %15 = vector.extract_strided_slice %0 {offsets = [0, 2], sizes = [8, 1], strides = [1, 1]} : vector<8x4xf32> to vector<8x1xf32>
    %c2 = arith.constant 2 : index
    %c0_6 = arith.constant 0 : index
    %16 = vector.load %arg2[%c2, %c0_6] : memref<4x128xf32, #tpu.memory_space<vmem>>, vector<1x128xf32>
    %17 = vector.broadcast %15 : vector<8x1xf32> to vector<8x128xf32>
    %18 = vector.broadcast %16 : vector<1x128xf32> to vector<8x128xf32>
    %19 = arith.mulf %17, %18 : vector<8x128xf32>
    %20 = arith.addf %14, %19 : vector<8x128xf32>
    %21 = vector.extract_strided_slice %0 {offsets = [0, 3], sizes = [8, 1], strides = [1, 1]} : vector<8x4xf32> to vector<8x1xf32>
    %c3 = arith.constant 3 : index
    %c0_7 = arith.constant 0 : index
    %22 = vector.load %arg2[%c3, %c0_7] : memref<4x128xf32, #tpu.memory_space<vmem>>, vector<1x128xf32>
    %23 = vector.broadcast %21 : vector<8x1xf32> to vector<8x128xf32>
    %24 = vector.broadcast %22 : vector<1x128xf32> to vector<8x128xf32>
    %25 = arith.mulf %23, %24 : vector<8x128xf32>
    %26 = arith.addf %20, %25 : vector<8x128xf32>
    %cst = arith.constant 0.000000e+00 : f32
    %27 = vector.broadcast %cst : f32 to vector<8x128xf32>
    %28 = arith.maximumf %26, %27 : vector<8x128xf32>
    %29 = arith.truncf %28 : vector<8x128xf32> to vector<8x128xbf16>
    %c0_8 = arith.constant 0 : index
    %c0_9 = arith.constant 0 : index
    %30 = vector.load %arg4[%c0_8, %c0_9] : memref<128x128xbf16, #tpu.memory_space<vmem>>, vector<128x128xbf16>
    %cst_10 = arith.constant dense<0.000000e+00> : vector<8x128xf32>
    %31 = tpu.matmul %29, %30, %cst_10 {dimension_numbers = #tpu.dot_dimension_numbers<[1], [0], [0], [1], [0, 0, 1, 1], [], []>} : vector<8x128xbf16>, vector<128x128xbf16>, vector<8x128xf32> -> vector<8x128xf32>
    %c0_11 = arith.constant 0 : index
    %c0_12 = arith.constant 0 : index
    %32 = vector.load %arg5[%c0_11, %c0_12] : memref<1x128xf32, #tpu.memory_space<vmem>>, vector<1x128xf32>
    %33 = vector.broadcast %32 : vector<1x128xf32> to vector<8x128xf32>
    %34 = arith.addf %31, %33 : vector<8x128xf32>
    %cst_13 = arith.constant 0.000000e+00 : f32
    %35 = vector.broadcast %cst_13 : f32 to vector<8x128xf32>
    %36 = arith.maximumf %34, %35 : vector<8x128xf32>
    %37 = arith.truncf %36 : vector<8x128xf32> to vector<8x128xbf16>
    %c0_14 = arith.constant 0 : index
    %c0_15 = arith.constant 0 : index
    %38 = vector.load %arg6[%c0_14, %c0_15] : memref<128x128xbf16, #tpu.memory_space<vmem>>, vector<128x128xbf16>
    %cst_16 = arith.constant dense<0.000000e+00> : vector<8x128xf32>
    %39 = tpu.matmul %37, %38, %cst_16 {dimension_numbers = #tpu.dot_dimension_numbers<[1], [0], [0], [1], [0, 0, 1, 1], [], []>} : vector<8x128xbf16>, vector<128x128xbf16>, vector<8x128xf32> -> vector<8x128xf32>
    %c0_17 = arith.constant 0 : index
    %c0_18 = arith.constant 0 : index
    %40 = vector.load %arg7[%c0_17, %c0_18] : memref<1x128xf32, #tpu.memory_space<vmem>>, vector<1x128xf32>
    %41 = vector.broadcast %40 : vector<1x128xf32> to vector<8x128xf32>
    %42 = arith.addf %39, %41 : vector<8x128xf32>
    %c0_19 = arith.constant 0 : index
    %c0_20 = arith.constant 0 : index
    %43 = vector.load %arg8[%c0_19, %c0_20] : memref<8x128xf32, #tpu.memory_space<vmem>>, vector<8x128xf32>
    tpu.vector_store %arg8[%c0_19, %c0_20], %42 {strides = array<i32>} : memref<8x128xf32, #tpu.memory_space<vmem>>, vector<8x128xf32>,
    return
  }
  func.func @transform_0(%arg0: i32) -> (i32, i32) {
    %c0_i32 = arith.constant 0 : i32
    %c0_i32_0 = arith.constant 0 : i32
    return %arg0, %c0_i32 : i32, i32
  }
  func.func @transform_1(%arg0: i32) -> (i32, i32) {
    %c0_i32 = arith.constant 0 : i32
    %c0_i32_0 = arith.constant 0 : i32
    %c0_i32_1 = arith.constant 0 : i32
    return %c0_i32, %c0_i32_0 : i32, i32
  }
  func.func @transform_2(%arg0: i32) -> (i32, i32) {
    %c0_i32 = arith.constant 0 : i32
    %c0_i32_0 = arith.constant 0 : i32
    %c0_i32_1 = arith.constant 0 : i32
    return %c0_i32, %c0_i32_0 : i32, i32
  }
  func.func @transform_3(%arg0: i32) -> (i32, i32) {
    %c0_i32 = arith.constant 0 : i32
    %c0_i32_0 = arith.constant 0 : i32
    %c0_i32_1 = arith.constant 0 : i32
    return %c0_i32, %c0_i32_0 : i32, i32
  }
  func.func @transform_4(%arg0: i32) -> (i32, i32) {
    %c0_i32 = arith.constant 0 : i32
    %c0_i32_0 = arith.constant 0 : i32
    %c0_i32_1 = arith.constant 0 : i32
    return %c0_i32, %c0_i32_0 : i32, i32
  }
  func.func @transform_5(%arg0: i32) -> (i32, i32) {
    %c0_i32 = arith.constant 0 : i32
    %c0_i32_0 = arith.constant 0 : i32
    %c0_i32_1 = arith.constant 0 : i32
    return %c0_i32, %c0_i32_0 : i32, i32
  }
  func.func @transform_6(%arg0: i32) -> (i32, i32) {
    %c0_i32 = arith.constant 0 : i32
    %c0_i32_0 = arith.constant 0 : i32
    %c0_i32_1 = arith.constant 0 : i32
    return %c0_i32, %c0_i32_0 : i32, i32
  }
  func.func @transform_7(%arg0: i32) -> (i32, i32) {
    %c0_i32 = arith.constant 0 : i32
    %c0_i32_0 = arith.constant 0 : i32
    return %arg0, %c0_i32 : i32, i32
  }
}

</mosaic_0001>

<llo_original>
// kernel: tpu_custom_call.1
$region0: #{tpu_custom_call.1}
  #allocation0 [shape = 'u32[]', space=smem, size = 0x4, offset = 0x4, fixed_abs, tag = 'smem constant byte address 0x4 - core index']
  #allocation1 [shape = 'u32[144,128]{1,0:T(1,128)}', space=vmem, size = 0x12000, scoped, tag = 'internal scratch']
  %s0 = inlined_call_operand.vmem [shape: f32[8,4], index: 0, kind: input, shape index: {}]
  %s1 = inlined_call_operand.vmem [shape: f32[4,128], index: 1, kind: input, shape index: {}]
  %s2 = inlined_call_operand.vmem [shape: f32[1,128], index: 2, kind: input, shape index: {}]
  %s3 = inlined_call_operand.hbm [shape: bf16[128,128], index: 3, kind: input, shape index: {}]
  %s4 = inlined_call_operand.vmem [shape: f32[1,128], index: 4, kind: input, shape index: {}]
  %s5 = inlined_call_operand.hbm [shape: bf16[128,128], index: 5, kind: input, shape index: {}]
  %s6 = inlined_call_operand.vmem [shape: f32[1,128], index: 6, kind: input, shape index: {}]
  %s7 = inlined_call_operand.hbm [shape: f32[8,128], index: 7, kind: output, shape index: {}]
  %s8 = sld [smem:[#allocation0]]
  $region46: #{tpu_custom_call.1} parent=0
    _
  %s10 = ssub.s32 1, %s8
  %s11 = scalar_select 0, %s10, %s8
  $region1: #{tpu_custom_call.1} parent=0
    #allocation2 [shape = 'u8[32768]{0}', space=vmem, size = 0x8000, scoped, tag = 'input window, operand 3, single buffered']
    #allocation3 [shape = 's32[1]{0}', space=sflag, size = 0x4, scoped, tag = 'scoped memory for tpu_custom_call.1']
    #allocation4 [shape = 's32[1]{0}', space=sflag, size = 0x4, scoped, tag = 'scoped memory for tpu_custom_call.1']
    #allocation5 [shape = 'u8[32768]{0}', space=vmem, size = 0x8000, scoped, tag = 'input window, operand 5, single buffered']
    #allocation6 [shape = 's32[1]{0}', space=sflag, size = 0x4, scoped, tag = 'scoped memory for tpu_custom_call.1']
    #allocation7 [shape = 'u8[4096]{0}', space=vmem, size = 0x1000, scoped, tag = 'output window, operand 0, single buffered']
    %12 = vsyncpa [#allocation3], 0
    %13 = vsyncpa [#allocation6], 0
    %14 = vsyncpa [#allocation4], 0
    // Predicated region
    $region2: #{tpu_custom_call.1} parent=1 // pred_check
      _
    $region3: #{tpu_custom_call.1} parent=1 // pred_check_branch
      %16 = sbr.rel (0) target = $region5
    $region4: #{tpu_custom_call.1} parent=1 // pred_region
      _
    $region5: #{tpu_custom_call.1} parent=1 // pred_fallthru
      _
    // Predicated region
    $region6: #{tpu_custom_call.1} parent=1 // pred_check
      _
    $region7: #{tpu_custom_call.1} parent=1 // pred_check_branch
      %18 = sbr.rel (0) target = $region9
    $region8: #{tpu_custom_call.1} parent=1 // pred_region
      _
    $region9: #{tpu_custom_call.1} parent=1 // pred_fallthru
      _
    // Predicated region
    $region10: #{tpu_custom_call.1} parent=1 // pred_check
      _
    $region11: #{tpu_custom_call.1} parent=1 // pred_check_branch
      %20 = sbr.rel (0) target = $region13
    $region12: #{tpu_custom_call.1} parent=1 // pred_region
      _
    $region13: #{tpu_custom_call.1} parent=1 // pred_fallthru
      _
    // Predicated region
    $region14: #{tpu_custom_call.1} parent=1 // pred_check
      _
    $region15: #{tpu_custom_call.1} parent=1 // pred_check_branch
      %22 = sbr.rel (0) target = $region17
    $region16: #{tpu_custom_call.1} parent=1 // pred_region
      %s24 = ssub.s32 1024, 1024
      %25 = vsyncadd [#allocation3], %s24
      %s26 = sshll.u32 [#allocation2], 4
      %s27 = int_to_ptr.vmem [resolvable:$true] %s26
      %32 = dma.hbm_to_vmem [thread:$0]  %s3, 1024, %s27, [#allocation3], 64, 64, 4
    $region17: #{tpu_custom_call.1} parent=1 // pred_fallthru
      _
    // Predicated region
    $region18: #{tpu_custom_call.1} parent=1 // pred_check
      _
    $region19: #{tpu_custom_call.1} parent=1 // pred_check_branch
      %34 = sbr.rel (0) target = $region21
    $region20: #{tpu_custom_call.1} parent=1 // pred_region
      _
    $region21: #{tpu_custom_call.1} parent=1 // pred_fallthru
      _
    // Predicated region
    $region22: #{tpu_custom_call.1} parent=1 // pred_check
      _
    $region23: #{tpu_custom_call.1} parent=1 // pred_check_branch
      %36 = sbr.rel (0) target = $region25
    $region24: #{tpu_custom_call.1} parent=1 // pred_region
      %s38 = ssub.s32 1024, 1024
      %39 = vsyncadd [#allocation6], %s38
      %s40 = sshll.u32 [#allocation5], 4
      %s41 = int_to_ptr.vmem [resolvable:$true] %s40
      %46 = dma.hbm_to_vmem [thread:$0]  %s5, 1024, %s41, [#allocation6], 64, 64, 4
    $region25: #{tpu_custom_call.1} parent=1 // pred_fallthru
      _
    // Predicated region
    $region26: #{tpu_custom_call.1} parent=1 // pred_check
      _
    $region27: #{tpu_custom_call.1} parent=1 // pred_check_branch
      %48 = sbr.rel (0) target = $region29
    $region28: #{tpu_custom_call.1} parent=1 // pred_region
      _
    $region29: #{tpu_custom_call.1} parent=1 // pred_fallthru
      _
    // Predicated region
    $region30: #{tpu_custom_call.1} parent=1 // pred_check
      _
    $region31: #{tpu_custom_call.1} parent=1 // pred_check_branch
      %50 = sbr.rel (0) target = $region33
    $region32: #{tpu_custom_call.1} parent=1 // pred_region
      %51 = dma.done [#allocation3], 1024
    $region33: #{tpu_custom_call.1} parent=1 // pred_fallthru
      _
    // Predicated region
    $region34: #{tpu_custom_call.1} parent=1 // pred_check
      _
    $region35: #{tpu_custom_call.1} parent=1 // pred_check_branch
      %53 = sbr.rel (0) target = $region37
    $region36: #{tpu_custom_call.1} parent=1 // pred_region
      %54 = dma.done [#allocation6], 1024
    $region37: #{tpu_custom_call.1} parent=1 // pred_fallthru
      _
    %v56 = vld [vmem:[%s0] sm:$0xff]
    %v57 = vld [vmem:[%s2] sm:$0x1]
    %v58 = vld [vmem:[%s1] sm:$0x1]
    %60 = vset.pattern.permute.xlu0 0
    %61 = vperm.xlu0 %60, %v56
    %v62 = vpop.permute.xlu0 %61
    %v64 = vlaneseq
    %v65 = vshrl.u32 %v64, 7
    %v66 = vsub.s32 0, %v65
    %v67 = vrot.slane %v58, %v66
    %v68 = vmul.f32 %v62, %v67
    %v70 = vlaneseq
    %v71 = vshrl.u32 %v70, 7
    %v72 = vsub.s32 0, %v71
    %v73 = vrot.slane %v57, %v72
    %v75 = vadd.f32 %v73, %v68
    %v76 = vld [vmem:[%s1 + $0x1] sm:$0x1]
    %77 = vset.pattern.permute.xlu0 1
    %78 = vperm.xlu0 %77, %v56
    %v79 = vpop.permute.xlu0 %78
    %v81 = vlaneseq
    %v82 = vshrl.u32 %v81, 7
    %v83 = vsub.s32 0, %v82
    %v84 = vrot.slane %v76, %v83
    %v85 = vmul.f32 %v79, %v84
    %v86 = vadd.f32 %v75, %v85
    %v87 = vld [vmem:[%s1 + $0x2] sm:$0x1]
    %88 = vset.pattern.permute.xlu0 2
    %89 = vperm.xlu0 %88, %v56
    %v90 = vpop.permute.xlu0 %89
    %v92 = vlaneseq
    %v93 = vshrl.u32 %v92, 7
    %v94 = vsub.s32 0, %v93
    %v95 = vrot.slane %v87, %v94
    %v96 = vmul.f32 %v90, %v95
    %v97 = vadd.f32 %v86, %v96
    %v98 = vld [vmem:[%s1 + $0x3] sm:$0x1]
    %99 = vset.pattern.permute.xlu0 3
    %100 = vperm.xlu0 %99, %v56
    %v101 = vpop.permute.xlu0 %100
    %v103 = vlaneseq
    %v104 = vshrl.u32 %v103, 7
    %v105 = vsub.s32 0, %v104
    %v106 = vrot.slane %v98, %v105
    %v107 = vmul.f32 %v101, %v106
    %v108 = vadd.f32 %v97, %v107
    %v109 = vmax.f32 %v108, 0.0
    %v110 = vpack.c.bf16 %v109, %v109
    %v111 = vld [vmem:[#allocation2] sm:$0xf]
    %v112 = vld [vmem:[#allocation2 + $0x4] sm:$0xf]
    %v113 = vld [vmem:[#allocation2 + $0x8] sm:$0xf]
    %v114 = vld [vmem:[#allocation2 + $0xc] sm:$0xf]
    %v115 = vld [vmem:[#allocation2 + $0x10] sm:$0xf]
    %v116 = vld [vmem:[#allocation2 + $0x14] sm:$0xf]
    %v117 = vld [vmem:[#allocation2 + $0x18] sm:$0xf]
    %v118 = vld [vmem:[#allocation2 + $0x1c] sm:$0xf]
    %v119 = vld [vmem:[#allocation2 + $0x20] sm:$0xf]
    %v120 = vld [vmem:[#allocation2 + $0x24] sm:$0xf]
    %v121 = vld [vmem:[#allocation2 + $0x28] sm:$0xf]
    %v122 = vld [vmem:[#allocation2 + $0x2c] sm:$0xf]
    %v123 = vld [vmem:[#allocation2 + $0x30] sm:$0xf]
    %v124 = vld [vmem:[#allocation2 + $0x34] sm:$0xf]
    %v125 = vld [vmem:[#allocation2 + $0x38] sm:$0xf]
    %v126 = vld [vmem:[#allocation2 + $0x3c] sm:$0xf]
    %v127 = vld [vmem:[%s4] sm:$0x1]
    %v129 = vlaneseq
    %v130 = vshrl.u32 %v129, 7
    %v131 = vsub.s32 0, %v130
    %v132 = vrot.slane %v127, %v131
    %v150 = vunpack.c.l.b16 %v111
    %v151 = vunpack.c.l.b16 %v112
    %v152 = vunpack.c.l.b16 %v113
    %v153 = vunpack.c.l.b16 %v114
    %v154 = vunpack.c.l.b16 %v115
    %v155 = vunpack.c.l.b16 %v116
    %v156 = vunpack.c.l.b16 %v117
    %v157 = vunpack.c.l.b16 %v118
    %v158 = vunpack.c.l.b16 %v119
    %v159 = vunpack.c.l.b16 %v120
    %v160 = vunpack.c.l.b16 %v121
    %v161 = vunpack.c.l.b16 %v122
    %v162 = vunpack.c.l.b16 %v123
    %v163 = vunpack.c.l.b16 %v124
    %v164 = vunpack.c.l.b16 %v125
    %v165 = vunpack.c.l.b16 %v126
    %v166 = vpack.c.b16 %v151, %v150
    %v167 = vpack.c.b16 %v153, %v152
    %v168 = vpack.c.b16 %v155, %v154
    %v169 = vpack.c.b16 %v157, %v156
    %v170 = vpack.c.b16 %v159, %v158
    %v171 = vpack.c.b16 %v161, %v160
    %v172 = vpack.c.b16 %v163, %v162
    %v173 = vpack.c.b16 %v165, %v164
    %182 = vmatprep.subr.bf16.mxu0 0
    %183 = vmatpush1.bf16.msra.mxu0 %v173
    %184 = vmatprep.subr.bf16.mxu0 0
    %185 = vmatpush1.bf16.msra.mxu0 %v172
    %186 = vmatprep.subr.bf16.mxu0 0
    %187 = vmatpush1.bf16.msra.mxu0 %v171
    %188 = vmatprep.subr.bf16.mxu0 0
    %189 = vmatpush1.bf16.msra.mxu0 %v170
    %190 = vmatprep.subr.bf16.mxu0 0
    %191 = vmatpush1.bf16.msra.mxu0 %v169
    %192 = vmatprep.subr.bf16.mxu0 0
    %193 = vmatpush1.bf16.msra.mxu0 %v168
    %194 = vmatprep.subr.bf16.mxu0 0
    %195 = vmatpush1.bf16.msra.mxu0 %v167
    %196 = vmatprep.subr.bf16.mxu0 0
    %197 = vmatpush1.bf16.msra.mxu0 %v166
    %198 = vmatprep.subr.bf16.mxu0 0
    %199 = vmatpush2.bf16.msra.mxu0 0
    %200 = vmatprep.subr.bf16.mxu0 0
    %201 = vmatpush2.bf16.msra.mxu0 0
    %202 = vmatprep.subr.bf16.mxu0 0
    %203 = vmatpush2.bf16.msra.mxu0 0
    %204 = vmatprep.subr.bf16.mxu0 0
    %205 = vmatpush2.bf16.msra.mxu0 0
    %206 = vmatprep.subr.bf16.mxu0 0
    %207 = vmatpush2.bf16.msra.mxu0 0
    %208 = vmatprep.subr.bf16.mxu0 0
    %209 = vmatpush2.bf16.msra.mxu0 0
    %210 = vmatprep.subr.bf16.mxu0 0
    %211 = vmatpush2.bf16.msra.mxu0 0
    %212 = vmatprep.subr.bf16.mxu0 0
    %213 = vmatpush2.bf16.msra.mxu0 0
    %214 = vmatprep.mubr.bf16.mxu0 0
    %215 = vmatmul.mubr.bf16.gmra.mxu0 %v110
    %v216 = vpop.f32.mrf.mxu0
    %v217 = vadd.f32 %v132, %v216
    %v218 = vpop.f32.mrf.mxu0
    %v219 = vpop.f32.mrf.mxu0
    %v220 = vpop.f32.mrf.mxu0
    %221 = vdwg.mxu0
    %v222 = vmax.f32 %v217, 0.0
    %v223 = vpack.c.bf16 %v222, %v222
    %v224 = vld [vmem:[#allocation5] sm:$0xf]
    %v225 = vld [vmem:[#allocation5 + $0x4] sm:$0xf]
    %v226 = vld [vmem:[#allocation5 + $0x8] sm:$0xf]
    %v227 = vld [vmem:[#allocation5 + $0xc] sm:$0xf]
    %v228 = vld [vmem:[#allocation5 + $0x10] sm:$0xf]
    %v229 = vld [vmem:[#allocation5 + $0x14] sm:$0xf]
    %v230 = vld [vmem:[#allocation5 + $0x18] sm:$0xf]
    %v231 = vld [vmem:[#allocation5 + $0x1c] sm:$0xf]
    %v232 = vld [vmem:[#allocation5 + $0x20] sm:$0xf]
    %v233 = vld [vmem:[#allocation5 + $0x24] sm:$0xf]
    %v234 = vld [vmem:[#allocation5 + $0x28] sm:$0xf]
    %v235 = vld [vmem:[#allocation5 + $0x2c] sm:$0xf]
    %v236 = vld [vmem:[#allocation5 + $0x30] sm:$0xf]
    %v237 = vld [vmem:[#allocation5 + $0x34] sm:$0xf]
    %v238 = vld [vmem:[#allocation5 + $0x38] sm:$0xf]
    %v239 = vld [vmem:[#allocation5 + $0x3c] sm:$0xf]
    %v240 = vld [vmem:[%s6] sm:$0x1]
    %v242 = vlaneseq
    %v243 = vshrl.u32 %v242, 7
    %v244 = vsub.s32 0, %v243
    %v245 = vrot.slane %v240, %v244
    %v263 = vunpack.c.l.b16 %v224
    %v264 = vunpack.c.l.b16 %v225
    %v265 = vunpack.c.l.b16 %v226
    %v266 = vunpack.c.l.b16 %v227
    %v267 = vunpack.c.l.b16 %v228
    %v268 = vunpack.c.l.b16 %v229
    %v269 = vunpack.c.l.b16 %v230
    %v270 = vunpack.c.l.b16 %v231
    %v271 = vunpack.c.l.b16 %v232
    %v272 = vunpack.c.l.b16 %v233
    %v273 = vunpack.c.l.b16 %v234
    %v274 = vunpack.c.l.b16 %v235
    %v275 = vunpack.c.l.b16 %v236
    %v276 = vunpack.c.l.b16 %v237
    %v277 = vunpack.c.l.b16 %v238
    %v278 = vunpack.c.l.b16 %v239
    %v279 = vpack.c.b16 %v264, %v263
    %v280 = vpack.c.b16 %v266, %v265
    %v281 = vpack.c.b16 %v268, %v267
    %v282 = vpack.c.b16 %v270, %v269
    %v283 = vpack.c.b16 %v272, %v271
    %v284 = vpack.c.b16 %v274, %v273
    %v285 = vpack.c.b16 %v276, %v275
    %v286 = vpack.c.b16 %v278, %v277
    %295 = vmatprep.subr.bf16.mxu0 0
    %296 = vmatpush1.bf16.msra.mxu0 %v286
    %297 = vmatprep.subr.bf16.mxu0 0
    %298 = vmatpush1.bf16.msra.mxu0 %v285
    %299 = vmatprep.subr.bf16.mxu0 0
    %300 = vmatpush1.bf16.msra.mxu0 %v284
    %301 = vmatprep.subr.bf16.mxu0 0
    %302 = vmatpush1.bf16.msra.mxu0 %v283
    %303 = vmatprep.subr.bf16.mxu0 0
    %304 = vmatpush1.bf16.msra.mxu0 %v282
    %305 = vmatprep.subr.bf16.mxu0 0
    %306 = vmatpush1.bf16.msra.mxu0 %v281
    %307 = vmatprep.subr.bf16.mxu0 0
    %308 = vmatpush1.bf16.msra.mxu0 %v280
    %309 = vmatprep.subr.bf16.mxu0 0
    %310 = vmatpush1.bf16.msra.mxu0 %v279
    %311 = vmatprep.subr.bf16.mxu0 0
    %312 = vmatpush2.bf16.msra.mxu0 0
    %313 = vmatprep.subr.bf16.mxu0 0
    %314 = vmatpush2.bf16.msra.mxu0 0
    %315 = vmatprep.subr.bf16.mxu0 0
    %316 = vmatpush2.bf16.msra.mxu0 0
    %317 = vmatprep.subr.bf16.mxu0 0
    %318 = vmatpush2.bf16.msra.mxu0 0
    %319 = vmatprep.subr.bf16.mxu0 0
    %320 = vmatpush2.bf16.msra.mxu0 0
    %321 = vmatprep.subr.bf16.mxu0 0
    %322 = vmatpush2.bf16.msra.mxu0 0
    %323 = vmatprep.subr.bf16.mxu0 0
    %324 = vmatpush2.bf16.msra.mxu0 0
    %325 = vmatprep.subr.bf16.mxu0 0
    %326 = vmatpush2.bf16.msra.mxu0 0
    %327 = vmatprep.mubr.bf16.mxu0 0
    %328 = vmatmul.mubr.bf16.gmra.mxu0 %v223
    %v329 = vpop.f32.mrf.mxu0
    %v330 = vadd.f32 %v245, %v329
    %v331 = vpop.f32.mrf.mxu0
    %v332 = vpop.f32.mrf.mxu0
    %v333 = vpop.f32.mrf.mxu0
    %334 = vdwg.mxu0
    %335 = vst [vmem:[#allocation7] sm:$0xff] %v330
    // Predicated region
    $region38: #{tpu_custom_call.1} parent=1 // pred_check
      _
    $region39: #{tpu_custom_call.1} parent=1 // pred_check_branch
      %337 = sbr.rel (0) target = $region41
    $region40: #{tpu_custom_call.1} parent=1 // pred_region
      %s339 = ssub.s32 128, 128
      %340 = vsyncadd [#allocation4], %s339
      %s342 = sshll.u32 [#allocation7], 4
      %s343 = int_to_ptr.vmem [resolvable:$true] %s342
      %345 = dma.vmem_to_hbm [thread:$0]  %s343, 128, %s7, [#allocation4]
    $region41: #{tpu_custom_call.1} parent=1 // pred_fallthru
      _
    // Predicated region
    $region42: #{tpu_custom_call.1} parent=1 // pred_check
      _
    $region43: #{tpu_custom_call.1} parent=1 // pred_check_branch
      %347 = sbr.rel (0) target = $region45
    $region44: #{tpu_custom_call.1} parent=1 // pred_region
      %348 = dma.done [#allocation4], 128
    $region45: #{tpu_custom_call.1} parent=1 // pred_fallthru
      _
    %349 = vsyncpa [#allocation3], 1
    %350 = vsyncpa [#allocation6], 1
    %351 = vsyncpa [#allocation4], 1

</llo_original>
